<compile_context>
chip_gen: v6e
topology: v6e:2x2x1
jax: 0.10.0
libtpu: 0.0.40
codegen_flags: <defaults>
</compile_context>

<pallas_src>
import functools

import jax
import jax.numpy as jnp
from jax.experimental import pallas as pl
from jax.experimental.pallas import tpu as pltpu


# ----------------------------------------------------------------------------
# "config" — deterministic, in-script (no checkpoint). feat_alpha / score_alpha
# / margin are stored by the PyTorch module but unused in forward().
# ----------------------------------------------------------------------------
CONFIG = dict(
    loss_feat_alpha=1.0,       # unused in forward
    loss_score_alpha=1.0,      # unused in forward
    loss_margin=100.0,         # unused in forward
    loss_sparse=8e-3,
    loss_smooth=8e-4,
    class_reweights=(0.6, 0.4),
    label_smoothing=0.1,
)
EPS = 1e-8


def _mem_loss_kernel(p_ref, up_ref, lab_ref, out_ref, *,
                     bs, w0, w1, label_smoothing,
                     bce_scale, sparse_scale, smooth_scale):
    t = pl.program_id(0)

    # Loads + cast to f32 for accumulation (inputs may be bf16 on v6e/v7x;
    # v5e has no bf16 VPU/EUP so all math stays f32 in-kernel).
    p = p_ref[...].astype(jnp.float32)
    up = up_ref[...].astype(jnp.float32)
    lab = lab_ref[...].astype(jnp.float32)

    # F.hardtanh(targets, ls, 1-ls) == clamp
    new_t = jnp.clip(lab, label_smoothing, 1.0 - label_smoothing)

    # Hoisted weight products, shared by both BCE terms.
    a = w0 * new_t
    b = w1 * (1.0 - new_t)

    # Weighted BCE elementwise contributions for BOTH score tensors, pre-scaled
    # by 1/(N*T) so a single sum yields mean(bce_p) + mean(bce_up).
    bce = -(a * (jnp.log(p + EPS) + jnp.log(up + EPS))
            + b * (jnp.log(1.0 - p + EPS) + jnp.log(1.0 - up + EPS)))

    # Abnormal-half mask from a row iota (replaces the unaligned p[bs:] slice).
    row = jax.lax.broadcasted_iota(jnp.int32, p.shape, 0)
    sparse_elem = jnp.where(row >= bs, sparse_scale * p, 0.0)

    combined = bce_scale * bce + sparse_elem

    # Temporal smoothness on the abnormal half:
    #   smooth(abn) = sum_{r=bs}^{N-2} (p[r+1] - p[r])^2   (last row repeated ->
    #   zero contribution).  d[r] = p[r+1]-p[r] lives on rows 0..N-2; keep rows
    #   r >= bs via an iota mask.  Column-independent, so tiling over T is safe.
    d = p[1:, :] - p[:-1, :]
    row_d = jax.lax.broadcasted_iota(jnp.int32, d.shape, 0)
    smooth_elem = jnp.where(row_d >= bs, smooth_scale * (d * d), 0.0)

    partial = jnp.sum(combined) + jnp.sum(smooth_elem)

    # Scalar accumulation directly in the persistent SMEM output.
    @pl.when(t == 0)
    def _():
        out_ref[0] = 0.0

    out_ref[0] += partial


def _pick_tile_t(t, max_tile):
    """Largest lane tile <= max_tile that evenly divides T (multiple of 128),
    else fall back to a single resident block."""
    if t <= max_tile:
        return t
    for cand in range(max_tile, 127, -128):
        if t % cand == 0:
            return cand
    return t


def mem_loss(p_score, updated_p_score, label, config=CONFIG, max_tile_t=2048):
    n, t = p_score.shape
    assert n % 2 == 0, "p_score must stack normal + abnormal halves (N = 2*bs)"
    bs = n // 2
    w0, w1 = config["class_reweights"]

    tile_t = _pick_tile_t(t, max_tile_t)
    num_tiles = t // tile_t

    kernel = functools.partial(
        _mem_loss_kernel,
        bs=bs,
        w0=float(w0),
        w1=float(w1),
        label_smoothing=float(config["label_smoothing"]),
        bce_scale=1.0 / float(n * t),
        sparse_scale=float(config["loss_sparse"]) / float(bs * t),
        smooth_scale=float(config["loss_smooth"]),
    )

    block = pl.BlockSpec((n, tile_t), lambda i: (0, i))
    out = pl.pallas_call(
        kernel,
        out_shape=jax.ShapeDtypeStruct((1,), jnp.float32),
        grid_spec=pltpu.PrefetchScalarGridSpec(
            num_scalar_prefetch=0,
            grid=(num_tiles,),
            in_specs=[block, block, block],
            out_specs=pl.BlockSpec(memory_space=pltpu.MemorySpace.SMEM),
        ),
        compiler_params=pltpu.CompilerParams(
            dimension_semantics=("arbitrary",)),
    )(p_score, updated_p_score, label)
    return out[0]


def mem_loss_ref(p_score, updated_p_score, label, config=CONFIG):
    """Pure-JAX reference mirroring the PyTorch code, for a sanity check."""
    n = p_score.shape[0]
    bs = n // 2
    w0, w1 = config["class_reweights"]
    ls = config["label_smoothing"]
    new_t = jnp.clip(label, ls, 1.0 - ls)

    def wbce(s):
        return jnp.mean(-w0 * new_t * jnp.log(s + EPS)
                        - w1 * (1.0 - new_t) * jnp.log(1.0 - s + EPS))

    abn = p_score[bs:]
    arr2 = jnp.concatenate([abn[1:], abn[-1:]], axis=0)
    sm = jnp.sum((arr2 - abn) ** 2)
    return (wbce(p_score) + wbce(updated_p_score)
            + config["loss_sparse"] * jnp.mean(abn)
            + config["loss_smooth"] * sm)


if __name__ == "__main__":
    key = jax.random.PRNGKey(0)
    k1, k2, k3 = jax.random.split(key, 3)

    bs, T = 2, 256          # p_score has 2*bs rows (normal half + abnormal half)
    N = 2 * bs

    # scores in (0,1) as produced by a sigmoid head
    p_score = jax.nn.sigmoid(jax.random.normal(k1, (N, T), jnp.float32))
    updated_p_score = jax.nn.sigmoid(jax.random.normal(k2, (N, T), jnp.float32))
    # binary snippet labels
    label = (jax.random.uniform(k3, (N, T)) > 0.5).astype(jnp.float32)

    ref = mem_loss_ref(p_score, updated_p_score, label)

    # Default path: whole arrays resident, single grid step.
    out_single = mem_loss(p_score, updated_p_score, label)
    # Lane-tiled accumulator path (exercises the multi-step grid).
    out_tiled = mem_loss(p_score, updated_p_score, label, max_tile_t=128)
    jax.block_until_ready((out_single, out_tiled))

    assert jnp.allclose(out_single, ref, rtol=1e-5, atol=1e-5), (out_single, ref)
    assert jnp.allclose(out_tiled, ref, rtol=1e-5, atol=1e-5), (out_tiled, ref)

    print("KERNEL_OK")
</pallas_src>

<mosaic_0001>
module attributes {stable_mosaic.version = 11 : i64} {
  func.func @_mem_loss_kernel(%arg0: i32, %arg1: memref<4x256xf32, #tpu.memory_space<vmem>>, %arg2: memref<4x256xf32, #tpu.memory_space<vmem>>, %arg3: memref<4x256xf32, #tpu.memory_space<vmem>>, %arg4: memref<1xf32, #tpu.memory_space<smem>>) attributes {dimension_semantics = [#tpu.dimension_semantics<arbitrary>], iteration_bounds = array<i64: 1>, scalar_prefetch = 0 : i64, scratch_operands = 0 : i64, tpu.core_type = #tpu.core_type<tc>, window_params = [{transform_indices = @transform_0, window_bounds = array<i64: 4, 256>}, {transform_indices = @transform_1, window_bounds = array<i64: 4, 256>}, {transform_indices = @transform_2, window_bounds = array<i64: 4, 256>}, {transform_indices = @transform_3, window_bounds = array<i64: 1>}]} {
    %c0 = arith.constant 0 : index
    %c0_0 = arith.constant 0 : index
    %0 = vector.load %arg1[%c0, %c0_0] : memref<4x256xf32, #tpu.memory_space<vmem>>, vector<4x256xf32>
    %c0_1 = arith.constant 0 : index
    %c0_2 = arith.constant 0 : index
    %1 = vector.load %arg2[%c0_1, %c0_2] : memref<4x256xf32, #tpu.memory_space<vmem>>, vector<4x256xf32>
    %c0_3 = arith.constant 0 : index
    %c0_4 = arith.constant 0 : index
    %2 = vector.load %arg3[%c0_3, %c0_4] : memref<4x256xf32, #tpu.memory_space<vmem>>, vector<4x256xf32>
    %cst = arith.constant 1.000000e-01 : f32
    %cst_5 = arith.constant 0.899999976 : f32
    %3 = vector.broadcast %cst : f32 to vector<4x256xf32>
    %4 = arith.maximumf %3, %2 : vector<4x256xf32>
    %5 = vector.broadcast %cst_5 : f32 to vector<4x256xf32>
    %6 = arith.minimumf %5, %4 : vector<4x256xf32>
    %cst_6 = arith.constant 6.000000e-01 : f32
    %7 = vector.broadcast %cst_6 : f32 to vector<4x256xf32>
    %8 = arith.mulf %7, %6 : vector<4x256xf32>
    %cst_7 = arith.constant 1.000000e+00 : f32
    %9 = vector.broadcast %cst_7 : f32 to vector<4x256xf32>
    %10 = arith.subf %9, %6 : vector<4x256xf32>
    %cst_8 = arith.constant 4.000000e-01 : f32
    %11 = vector.broadcast %cst_8 : f32 to vector<4x256xf32>
    %12 = arith.mulf %11, %10 : vector<4x256xf32>
    %cst_9 = arith.constant 9.99999993E-9 : f32
    %13 = vector.broadcast %cst_9 : f32 to vector<4x256xf32>
    %14 = arith.addf %0, %13 : vector<4x256xf32>
    %15 = math.log %14 : vector<4x256xf32>
    %cst_10 = arith.constant 9.99999993E-9 : f32
    %16 = vector.broadcast %cst_10 : f32 to vector<4x256xf32>
    %17 = arith.addf %1, %16 : vector<4x256xf32>
    %18 = math.log %17 : vector<4x256xf32>
    %19 = arith.addf %15, %18 : vector<4x256xf32>
    %20 = arith.mulf %8, %19 : vector<4x256xf32>
    %cst_11 = arith.constant 1.000000e+00 : f32
    %21 = vector.broadcast %cst_11 : f32 to vector<4x256xf32>
    %22 = arith.subf %21, %0 : vector<4x256xf32>
    %cst_12 = arith.constant 9.99999993E-9 : f32
    %23 = vector.broadcast %cst_12 : f32 to vector<4x256xf32>
    %24 = arith.addf %22, %23 : vector<4x256xf32>
    %25 = math.log %24 : vector<4x256xf32>
    %cst_13 = arith.constant 1.000000e+00 : f32
    %26 = vector.broadcast %cst_13 : f32 to vector<4x256xf32>
    %27 = arith.subf %26, %1 : vector<4x256xf32>
    %cst_14 = arith.constant 9.99999993E-9 : f32
    %28 = vector.broadcast %cst_14 : f32 to vector<4x256xf32>
    %29 = arith.addf %27, %28 : vector<4x256xf32>
    %30 = math.log %29 : vector<4x256xf32>
    %31 = arith.addf %25, %30 : vector<4x256xf32>
    %32 = arith.mulf %12, %31 : vector<4x256xf32>
    %33 = arith.addf %20, %32 : vector<4x256xf32>
    %cst_15 = arith.constant 0.000000e+00 : f32
    %34 = vector.broadcast %cst_15 : f32 to vector<4x256xf32>
    %35 = arith.subf %34, %33 : vector<4x256xf32>
    %36 = tpu.iota {dimensions = array<i32: 0>} : vector<4x256xi32>
    %c2_i32 = arith.constant 2 : i32
    %37 = vector.broadcast %c2_i32 : i32 to vector<4x256xi32>
    %38 = arith.cmpi sge, %36, %37 : vector<4x256xi32>
    %cst_16 = arith.constant 1.562500e-05 : f32
    %39 = vector.broadcast %cst_16 : f32 to vector<4x256xf32>
    %40 = arith.mulf %39, %0 : vector<4x256xf32>
    %cst_17 = arith.constant 0.000000e+00 : f32
    %41 = vector.broadcast %cst_17 : f32 to vector<4x256xf32>
    %42 = arith.select %38, %40, %41 : vector<4x256xi1>, vector<4x256xf32>
    %cst_18 = arith.constant 9.765625E-4 : f32
    %43 = vector.broadcast %cst_18 : f32 to vector<4x256xf32>
    %44 = arith.mulf %43, %35 : vector<4x256xf32>
    %45 = arith.addf %44, %42 : vector<4x256xf32>
    %46 = vector.extract_strided_slice %0 {offsets = [1, 0], sizes = [3, 256], strides = [1, 1]} : vector<4x256xf32> to vector<3x256xf32>
    %47 = vector.extract_strided_slice %0 {offsets = [0, 0], sizes = [3, 256], strides = [1, 1]} : vector<4x256xf32> to vector<3x256xf32>
    %48 = arith.subf %46, %47 : vector<3x256xf32>
    %49 = tpu.iota {dimensions = array<i32: 0>} : vector<3x256xi32>
    %c2_i32_19 = arith.constant 2 : i32
    %50 = vector.broadcast %c2_i32_19 : i32 to vector<3x256xi32>
    %51 = arith.cmpi sge, %49, %50 : vector<3x256xi32>
    %52 = arith.mulf %48, %48 : vector<3x256xf32>
    %cst_20 = arith.constant 8.000000e-04 : f32
    %53 = vector.broadcast %cst_20 : f32 to vector<3x256xf32>
    %54 = arith.mulf %53, %52 : vector<3x256xf32>
    %cst_21 = arith.constant 0.000000e+00 : f32
    %55 = vector.broadcast %cst_21 : f32 to vector<3x256xf32>
    %56 = arith.select %51, %54, %55 : vector<3x256xi1>, vector<3x256xf32>
    %57 = vector.shape_cast %45 : vector<4x256xf32> to vector<1x4x256xf32>
    %cst_22 = arith.constant dense<0.000000e+00> : vector<1xf32>
    %58 = vector.multi_reduction <add>, %57, %cst_22 [1, 2] : vector<1x4x256xf32> to vector<1xf32>
    %59 = vector.shape_cast %58 : vector<1xf32> to vector<1x1x1xf32>
    %60 = vector.extract %59[0, 0, 0] : f32 from vector<1x1x1xf32>
    %61 = vector.shape_cast %56 : vector<3x256xf32> to vector<1x3x256xf32>
    %cst_23 = arith.constant dense<0.000000e+00> : vector<1xf32>
    %62 = vector.multi_reduction <add>, %61, %cst_23 [1, 2] : vector<1x3x256xf32> to vector<1xf32>
    %63 = vector.shape_cast %62 : vector<1xf32> to vector<1x1x1xf32>
    %64 = vector.extract %63[0, 0, 0] : f32 from vector<1x1x1xf32>
    %65 = arith.addf %60, %64 : f32
    %c0_i32 = arith.constant 0 : i32
    %66 = arith.cmpi eq, %arg0, %c0_i32 : i32
    %67 = arith.extui %66 : i1 to i32
    %c0_i32_24 = arith.constant 0 : i32
    %68 = arith.cmpi ne, %67, %c0_i32_24 : i32
    scf.if %68 {
      %cst_27 = arith.constant 0.000000e+00 : f32
      %c0_28 = arith.constant 0 : index
      %72 = memref.load %arg4[%c0_28] : memref<1xf32, #tpu.memory_space<smem>>
      memref.store %cst_27, %arg4[%c0_28] : memref<1xf32, #tpu.memory_space<smem>>
    } else {
    }
    %c0_25 = arith.constant 0 : index
    %69 = memref.load %arg4[%c0_25] : memref<1xf32, #tpu.memory_space<smem>>
    %70 = arith.addf %69, %65 : f32
    %c0_26 = arith.constant 0 : index
    %71 = memref.load %arg4[%c0_26] : memref<1xf32, #tpu.memory_space<smem>>
    memref.store %70, %arg4[%c0_26] : memref<1xf32, #tpu.memory_space<smem>>
    return
  }
  func.func @transform_0(%arg0: i32) -> (i32, i32) {
    %c0_i32 = arith.constant 0 : i32
    %c0_i32_0 = arith.constant 0 : i32
    return %c0_i32, %arg0 : i32, i32
  }
  func.func @transform_1(%arg0: i32) -> (i32, i32) {
    %c0_i32 = arith.constant 0 : i32
    %c0_i32_0 = arith.constant 0 : i32
    return %c0_i32, %arg0 : i32, i32
  }
  func.func @transform_2(%arg0: i32) -> (i32, i32) {
    %c0_i32 = arith.constant 0 : i32
    %c0_i32_0 = arith.constant 0 : i32
    return %c0_i32, %arg0 : i32, i32
  }
  func.func @transform_3(%arg0: i32) -> i32 {
    %c0_i32 = arith.constant 0 : i32
    %c0_i32_0 = arith.constant 0 : i32
    return %c0_i32 : i32
  }
}

</mosaic_0001>

<llo_original>
// kernel: tpu_custom_call.1
$region0: #{tpu_custom_call.1}
  #allocation0 [shape = 'u32[]', space=smem, size = 0x4, offset = 0x4, fixed_abs, tag = 'smem constant byte address 0x4 - core index']
  #allocation1 [shape = 'u32[144,128]{1,0:T(1,128)}', space=vmem, size = 0x12000, scoped, tag = 'internal scratch']
  %s0 = inlined_call_operand.hbm [shape: f32[4,256], index: 0, kind: input, shape index: {}]
  %s1 = inlined_call_operand.hbm [shape: f32[4,256], index: 1, kind: input, shape index: {}]
  %s2 = inlined_call_operand.hbm [shape: f32[4,256], index: 2, kind: input, shape index: {}]
  %s3 = inlined_call_operand.hbm [shape: f32[1], index: 3, kind: output, shape index: {}]
  %s4 = sld [smem:[#allocation0]]
  $region38: #{tpu_custom_call.1} parent=0
    _
  %s6 = ssub.s32 1, %s4
  %s7 = scalar_select 0, %s6, %s4
  $region1: #{tpu_custom_call.1} parent=0
    #allocation2 [shape = 'u8[4096]{0}', space=vmem, size = 0x1000, scoped, tag = 'input window, operand 0, single buffered']
    #allocation3 [shape = 's32[1]{0}', space=sflag, size = 0x4, scoped, tag = 'scoped memory for tpu_custom_call.1']
    #allocation4 [shape = 's32[1]{0}', space=sflag, size = 0x4, scoped, tag = 'scoped memory for tpu_custom_call.1']
    #allocation5 [shape = 'u8[4096]{0}', space=vmem, size = 0x1000, scoped, tag = 'input window, operand 1, single buffered']
    #allocation6 [shape = 's32[1]{0}', space=sflag, size = 0x4, scoped, tag = 'scoped memory for tpu_custom_call.1']
    #allocation7 [shape = 'u8[4096]{0}', space=vmem, size = 0x1000, scoped, tag = 'input window, operand 2, single buffered']
    #allocation8 [shape = 'u8[512]{0}', space=smem, size = 0x200, scoped, tag = 'output window, operand 0, single buffered']
    %8 = vsyncpa [#allocation3], 0
    %9 = vsyncpa [#allocation6], 0
    %10 = vsyncpa [#allocation4], 0
    // Predicated region
    $region2: #{tpu_custom_call.1} parent=1 // pred_check
      _
    $region3: #{tpu_custom_call.1} parent=1 // pred_check_branch
      %12 = sbr.rel (0) target = $region5
    $region4: #{tpu_custom_call.1} parent=1 // pred_region
      %s14 = ssub.s32 128, 128
      %15 = vsyncadd [#allocation3], %s14
      %s17 = sshll.u32 [#allocation2], 4
      %s18 = int_to_ptr.vmem [resolvable:$true] %s17
      %20 = dma.hbm_to_vmem [thread:$0]  %s0, 128, %s18, [#allocation3]
    $region5: #{tpu_custom_call.1} parent=1 // pred_fallthru
      _
    // Predicated region
    $region6: #{tpu_custom_call.1} parent=1 // pred_check
      _
    $region7: #{tpu_custom_call.1} parent=1 // pred_check_branch
      %22 = sbr.rel (0) target = $region9
    $region8: #{tpu_custom_call.1} parent=1 // pred_region
      %s24 = ssub.s32 128, 128
      %25 = vsyncadd [#allocation6], %s24
      %s27 = sshll.u32 [#allocation5], 4
      %s28 = int_to_ptr.vmem [resolvable:$true] %s27
      %30 = dma.hbm_to_vmem [thread:$0]  %s1, 128, %s28, [#allocation6]
    $region9: #{tpu_custom_call.1} parent=1 // pred_fallthru
      _
    // Predicated region
    $region10: #{tpu_custom_call.1} parent=1 // pred_check
      _
    $region11: #{tpu_custom_call.1} parent=1 // pred_check_branch
      %32 = sbr.rel (0) target = $region13
    $region12: #{tpu_custom_call.1} parent=1 // pred_region
      %s34 = ssub.s32 128, 128
      %35 = vsyncadd [#allocation6], %s34
      %s37 = sshll.u32 [#allocation7], 4
      %s38 = int_to_ptr.vmem [resolvable:$true] %s37
      %40 = dma.hbm_to_vmem [thread:$0]  %s2, 128, %s38, [#allocation6]
    $region13: #{tpu_custom_call.1} parent=1 // pred_fallthru
      _
    // Predicated region
    $region14: #{tpu_custom_call.1} parent=1 // pred_check
      _
    $region15: #{tpu_custom_call.1} parent=1 // pred_check_branch
      %42 = sbr.rel (0) target = $region17
    $region16: #{tpu_custom_call.1} parent=1 // pred_region
      %43 = dma.done [#allocation3], 128
    $region17: #{tpu_custom_call.1} parent=1 // pred_fallthru
      _
    // Predicated region
    $region18: #{tpu_custom_call.1} parent=1 // pred_check
      _
    $region19: #{tpu_custom_call.1} parent=1 // pred_check_branch
      %45 = sbr.rel (0) target = $region21
    $region20: #{tpu_custom_call.1} parent=1 // pred_region
      %46 = dma.done [#allocation6], 128
    $region21: #{tpu_custom_call.1} parent=1 // pred_fallthru
      _
    // Predicated region
    $region22: #{tpu_custom_call.1} parent=1 // pred_check
      _
    $region23: #{tpu_custom_call.1} parent=1 // pred_check_branch
      %48 = sbr.rel (0) target = $region25
    $region24: #{tpu_custom_call.1} parent=1 // pred_region
      %49 = dma.done [#allocation6], 128
    $region25: #{tpu_custom_call.1} parent=1 // pred_fallthru
      _
    %v50 = vld [vmem:[#allocation2] sm:$0xff]
    %v51 = vld [vmem:[#allocation5] sm:$0xff]
    %v52 = vld [vmem:[#allocation7] sm:$0xff]
    %v53 = vmax.f32 %v52, 0.1
    %v54 = vmin.f32 %v53, 0.9
    %v55 = vmul.f32 %v54, 0.6
    %v56 = vsub.f32 1.0, %v54
    %v57 = vmul.f32 %v56, 0.4
    %v58 = vadd.f32 %v50, 1e-08
    %v59 = vlog2.pop %v58
    %v60 = vmul.f32 %v59, 0.6931472
    %v61 = vadd.f32 %v51, 1e-08
    %v62 = vlog2.pop %v61
    %v63 = vmul.f32 %v62, 0.6931472
    %v64 = vadd.f32 %v60, %v63
    %v65 = vmul.f32 %v55, %v64
    %v66 = vsub.f32 1.0, %v50
    %v67 = vadd.f32 %v66, 1e-08
    %v68 = vlog2.pop %v67
    %v69 = vmul.f32 %v68, 0.6931472
    %v70 = vsub.f32 1.0, %v51
    %v71 = vadd.f32 %v70, 1e-08
    %v72 = vlog2.pop %v71
    %v73 = vmul.f32 %v72, 0.6931472
    %v74 = vadd.f32 %v69, %v73
    %v75 = vmul.f32 %v57, %v74
    %v76 = vadd.f32 %v65, %v75
    %v77 = vsub.f32 0.0, %v76
    %v78 = vlaneseq
    %v79 = vshrl.u32 %v78, 7
    %vm80 = vcmp.ge.s32.totalorder %v79, 2
    %v81 = vmul.f32 %v50, 1.5625e-05
    %v83 = vcombine.high %v81, %v81
    %v85 = vsel %vm80, %v81, 0.0
    %v86 = vsel %vm80, %v83, 0.0
    %v87 = vmul.f32 %v77, 0.0009765625
    %v90 = vcombine.low %v85, %v86
    %v92 = vadd.f32 %v87, %v90
    %v94 = vrot.slane %v50, 7
    %v96 = vsub.f32 %v50, %v94
    %v97 = vmul.f32 %v96, %v96
    %v98 = vmul.f32 %v97, 0.0008
    %v100 = vcombine.high %v98, %v98
    %v101 = vrot.slane %v98, 1
    %v102 = vrot.slane %v100, 1
    %v105 = vsel %vm80, %v101, 0.0
    %v106 = vsel %vm80, %v102, 0.0
    %v108 = vcombine.high %v92, %v92
    %vm110 = vcmask 1043456
    %v111 = vsel %vm110, %v92, 0.0
    %v112 = vsel %vm110, %v108, 0.0
    %v113 = vadd.f32 %v111, %v112
    %114 = vadd.xlane.f32.xlu0 %v113
    %v115 = vpop.xlane.xlu0 %114
    %v116 = vrot.slane %v115, 4
    %v117 = vadd.f32 %v115, %v116
    %v118 = vrot.slane %v117, 2
    %v119 = vadd.f32 %v117, %v118
    %v120 = vrot.slane %v119, 1
    %v121 = vadd.f32 %v119, %v120
    %s122 = vtos %v121
    %vm123 = vcmask 1042432
    %v124 = vsel %vm123, %v105, 0.0
    %v125 = vsel %vm123, %v106, 0.0
    %v126 = vadd.f32 %v124, %v125
    %127 = vadd.xlane.f32.xlu0 %v126
    %v128 = vpop.xlane.xlu0 %127
    %v129 = vrot.slane %v128, 4
    %v130 = vadd.f32 %v128, %v129
    %v131 = vrot.slane %v130, 2
    %v132 = vadd.f32 %v130, %v131
    %v133 = vrot.slane %v132, 1
    %v134 = vadd.f32 %v132, %v133
    %s135 = vtos %v134
    %s136 = sadd.f32 %s122, %s135
    %p137 = scmp.eq.s32.totalorder 0, 0
    // Predicated region
    $region26: #{tpu_custom_call.1} parent=1 // pred_check
      %p138 = pneg %p137
    $region27: #{tpu_custom_call.1} parent=1 // pred_check_branch
      %140 = sbr.rel (%p138) target = $region29
    $region28: #{tpu_custom_call.1} parent=1 // pred_region
      %s141 = scalar_lea.smem [#allocation8], 0
      %142 = sst [smem:[%s141]] 0.0
    $region29: #{tpu_custom_call.1} parent=1 // pred_fallthru
      _
    %s143 = sld [smem:[#allocation8]]
    %s144 = sadd.f32 %s143, %s136
    %s145 = scalar_lea.smem [#allocation8], 0
    %146 = sst [smem:[%s145]] %s144
    // Predicated region
    $region30: #{tpu_custom_call.1} parent=1 // pred_check
      _
    $region31: #{tpu_custom_call.1} parent=1 // pred_check_branch
      %148 = sbr.rel (0) target = $region33
    $region32: #{tpu_custom_call.1} parent=1 // pred_region
      %s150 = ssub.s32 16, 16
      %151 = vsyncadd [#allocation4], %s150
      %154 = dma.smem_to_hbm [#allocation8], 16, %s3, [#allocation4]
    $region33: #{tpu_custom_call.1} parent=1 // pred_fallthru
      _
    // Predicated region
    $region34: #{tpu_custom_call.1} parent=1 // pred_check
      _
    $region35: #{tpu_custom_call.1} parent=1 // pred_check_branch
      %156 = sbr.rel (0) target = $region37
    $region36: #{tpu_custom_call.1} parent=1 // pred_region
      %157 = dma.done [#allocation4], 16
    $region37: #{tpu_custom_call.1} parent=1 // pred_fallthru
      _
    %158 = sfence
    %159 = vsyncpa [#allocation3], 1
    %160 = vsyncpa [#allocation6], 1
    %161 = vsyncpa [#allocation4], 1

</llo_original>
